<compile_context>
chip_gen: v7x
topology: tpu7x:2x2x1
jax: 0.10.0
libtpu: 0.0.40
codegen_flags: <defaults>
</compile_context>

<pallas_src>
import jax
import jax.numpy as jnp
from jax.experimental import pallas as pl
from jax.experimental.pallas import tpu as pltpu

_LANE = 128
_VMEM_LIMIT_BYTES = 48 * 1024 * 1024   # safe on v5e/v6e (128 MiB phys) and v7x (64 MiB phys)
_VMEM_BUDGET_BYTES = 36 * 1024 * 1024  # conservative working-set budget (counts 2x buffering)
_TINY_PROBLEM_THRESHOLD = 1_000_000    # M*K*N below this -> plain fused XLA dot wins


def _round_up(a: int, b: int) -> int:
    return -(-a // b) * b


def _sublane(dtype) -> int:
    return 16 if jnp.dtype(dtype).itemsize == 2 else 8


# ----------------------------- kernels --------------------------------------


def _fh_kernel_resident(x_ref, w_ref, b_ref, o_ref):
    # x_ref: [TM, K]  w_ref: [K, Npad] (VMEM-resident)  b_ref: [1, Npad] f32
    acc = jnp.dot(x_ref[...], w_ref[...], preferred_element_type=jnp.float32)
    o_ref[...] = (acc + b_ref[...]).astype(o_ref.dtype)


def _fh_kernel_ktiled(x_ref, w_ref, b_ref, o_ref, acc_ref):
    # x_ref: [TM, TK]  w_ref: [TK, Npad]  b_ref: [1, Npad] f32
    # acc_ref: [TM, Npad] f32 scratch, resident across the (last, arbitrary) K axis.
    k = pl.program_id(1)

    @pl.when(k == 0)
    def _():
        # Bias folded into the accumulator init (saves an epilogue VPU add).
        acc_ref[...] = jnp.broadcast_to(b_ref[...], acc_ref.shape)

    acc_ref[...] += jnp.dot(x_ref[...], w_ref[...],
                            preferred_element_type=jnp.float32)

    @pl.when(k == pl.num_programs(1) - 1)
    def _():
        o_ref[...] = acc_ref[...].astype(o_ref.dtype)


# --------------------------- wrapper / dispatch ------------------------------


def prepare_flatten_head_params(weight, bias, compute_dtype=jnp.bfloat16):
    """Static weight prep: transpose to [K, N], cast, lane-pad N to 128.

    In production call this once per model and cache the result (it is pure
    weight plumbing and should not be paid on every forward call).
    """
    target_window, nf = weight.shape
    assert bias.shape == (target_window,)
    n_pad = _round_up(target_window, _LANE)
    w_t = weight.T.astype(compute_dtype)                       # [K, N]
    b2 = bias.astype(jnp.float32).reshape(1, target_window)    # [1, N] f32 epilogue
    if n_pad != target_window:
        w_t = jnp.pad(w_t, ((0, 0), (0, n_pad - target_window)))
        b2 = jnp.pad(b2, ((0, 0), (0, n_pad - target_window)))
    return w_t, b2


def _choose_tk(K: int, block_k: int):
    """Largest 128-multiple <= block_k that divides K exactly (None if none)."""
    cap = (min(_round_up(block_k, _LANE), K) // _LANE) * _LANE
    for cand in range(cap, 0, -_LANE):
        if K % cand == 0:
            return cand
    return None


def flatten_head_forward(x, weight, bias, *, block_m=512, block_k=2048,
                         compute_dtype=jnp.bfloat16,
                         dispatch_tiny_to_xla=True,
                         split_m_for_megacore=True):
    """FlattenHead forward.

    Args:
      x:      [B, n_vars, d_model, patch_num]
      weight: [target_window, nf]  (PyTorch nn.Linear layout, nf = d_model*patch_num)
      bias:   [target_window]
      compute_dtype: streaming dtype for x / W (default bf16; accumulation stays f32,
        output keeps x.dtype).  Pass x.dtype for bit-faithful f32 numerics.
      dispatch_tiny_to_xla: route tiny problems to a plain fused XLA dot.
    Returns:
      y: [B, n_vars, target_window]
    """
    B, n_vars, d_model, patch_num = x.shape
    K = d_model * patch_num
    N, nf = weight.shape
    assert nf == K, (nf, K)
    assert bias.shape == (N,)
    out_dtype = x.dtype
    M = B * n_vars

    # nn.Flatten(start_dim=-2): row-major merge of the last two dims -> a free view.
    x2 = x.reshape(M, K)

    if dispatch_tiny_to_xla and (M * K * N < _TINY_PROBLEM_THRESHOLD or M < 8):
        # Pallas fixed overhead dominates at these sizes; let XLA fuse the dot.
        y = (jnp.dot(x2, weight.T, preferred_element_type=jnp.float32)
             + bias.astype(jnp.float32)).astype(out_dtype)
        return y.reshape(B, n_vars, N)

    # Static weight prep (hoist + cache in production, see prepare_flatten_head_params).
    w_t, b2 = prepare_flatten_head_params(weight, bias, compute_dtype)
    n_pad = w_t.shape[1]

    if jnp.dtype(compute_dtype) != jnp.dtype(x2.dtype):
        x2 = x2.astype(compute_dtype)

    cdt_bytes = jnp.dtype(compute_dtype).itemsize
    out_bytes = jnp.dtype(out_dtype).itemsize
    sub = _sublane(compute_dtype)

    # ---------------- M tiling (no activation padding; edge blocks are masked) ----
    if M <= _round_up(block_m, sub):
        tm = M                                   # block == full dim -> always layout-legal
    else:
        tm = _round_up(block_m, sub)
    if split_m_for_megacore and pl.cdiv(M, tm) < 2 and M >= 2 * sub:
        tm = _round_up(pl.cdiv(M, 2), sub)       # >=2 parallel M tiles for v7x's 2 TCs

    # ---------------- resident-weight fast path sizing ----------------------------
    def _resident_fits(tm_):
        working = 2 * (K * n_pad * cdt_bytes       # weight (counted double-buffered)
                       + tm_ * K * cdt_bytes       # activation tile (double-buffered)
                       + tm_ * n_pad * out_bytes   # output tile (double-buffered)
                       + n_pad * 4)                # bias
        return working <= _VMEM_BUDGET_BYTES

    tm_res = None
    cand = tm
    while cand >= 1:
        if _resident_fits(cand):
            tm_res = cand
            break
        nxt = max(sub, _round_up(max(cand // 2, 1), sub))
        if nxt >= cand:
            break
        cand = nxt

    if tm_res is not None:
        # ---- K-untiled fast path: whole weight resident, one dot per M tile ----
        grid = (pl.cdiv(M, tm_res),)
        out = pl.pallas_call(
            _fh_kernel_resident,
            out_shape=jax.ShapeDtypeStruct((M, n_pad), out_dtype),
            grid_spec=pltpu.PrefetchScalarGridSpec(
                num_scalar_prefetch=0,
                grid=grid,
                in_specs=[
                    pl.BlockSpec((tm_res, K), lambda i: (i, 0)),    # activations
                    pl.BlockSpec((K, n_pad), lambda i: (0, 0)),     # resident weight
                    pl.BlockSpec((1, n_pad), lambda i: (0, 0)),     # bias
                ],
                out_specs=pl.BlockSpec((tm_res, n_pad), lambda i: (i, 0)),
            ),
            compiler_params=pltpu.CompilerParams(
                dimension_semantics=("parallel",),
                vmem_limit_bytes=_VMEM_LIMIT_BYTES),
        )(x2, w_t, b2)
    else:
        # ---- K-tiled fallback (very large nf): tk | K, bias folded into init ----
        tk = _choose_tk(K, block_k)
        if tk is None:
            # Rare: K not a multiple of 128 and weight too big to keep resident.
            tk = min(_round_up(block_k, _LANE), _round_up(K, _LANE))
            k_pad = _round_up(K, tk)
            x2 = jnp.pad(x2, ((0, 0), (0, k_pad - K)))
            w_t = jnp.pad(w_t, ((0, k_pad - K), (0, 0)))
            K = k_pad
        grid = (pl.cdiv(M, tm), K // tk)
        out = pl.pallas_call(
            _fh_kernel_ktiled,
            out_shape=jax.ShapeDtypeStruct((M, n_pad), out_dtype),
            grid_spec=pltpu.PrefetchScalarGridSpec(
                num_scalar_prefetch=0,
                grid=grid,
                in_specs=[
                    pl.BlockSpec((tm, tk), lambda i, k: (i, k)),     # activations
                    pl.BlockSpec((tk, n_pad), lambda i, k: (k, 0)),  # weight (K-tiled)
                    pl.BlockSpec((1, n_pad), lambda i, k: (0, 0)),   # bias
                ],
                out_specs=pl.BlockSpec((tm, n_pad), lambda i, k: (i, 0)),
                scratch_shapes=[pltpu.VMEM((tm, n_pad), jnp.float32)],
            ),
            compiler_params=pltpu.CompilerParams(
                dimension_semantics=("parallel", "arbitrary"),
                vmem_limit_bytes=_VMEM_LIMIT_BYTES),
        )(x2, w_t, b2)

    if n_pad != N:
        out = out[:, :N]   # strip lane padding of target_window
    # Dropout(head_dropout=0) -> identity (inference semantics).
    return out.reshape(B, n_vars, N)


if __name__ == "__main__":
    # Small shapes consistent with PatchTST's FlattenHead:
    # x: [B, n_vars, d_model, patch_num], nf = d_model * patch_num.
    B, n_vars, d_model, patch_num = 2, 4, 16, 8
    nf = d_model * patch_num            # 128
    target_window = 24

    key = jax.random.PRNGKey(0)
    kx, kw, kb = jax.random.split(key, 3)
    x = jax.random.normal(kx, (B, n_vars, d_model, patch_num), dtype=jnp.float32)
    # Deterministic nn.Linear-style init (uniform in +/- 1/sqrt(nf)).
    bound = 1.0 / (nf ** 0.5)
    weight = jax.random.uniform(kw, (target_window, nf), jnp.float32, -bound, bound)
    bias = jax.random.uniform(kb, (target_window,), jnp.float32, -bound, bound)

    # dispatch_tiny_to_xla=False so the smoke test actually exercises the Pallas kernel
    # (production would leave it True and let tiny shapes use a fused XLA dot).
    y = flatten_head_forward(x, weight, bias, dispatch_tiny_to_xla=False)
    y = jax.block_until_ready(y)
    assert y.shape == (B, n_vars, target_window)

    # References: same dtype policy as the kernel (bf16 operands, f32 accum) -> tight;
    # pure f32 -> loose (bf16 streaming is an intentional precision trade).
    x_flat = x.reshape(B, n_vars, nf)
    y_ref_bf16 = (x_flat.astype(jnp.bfloat16).astype(jnp.float32)
                  @ weight.T.astype(jnp.bfloat16).astype(jnp.float32) + bias)
    y_ref_f32 = x_flat @ weight.T + bias
    assert jnp.allclose(y, y_ref_bf16, atol=5e-3, rtol=5e-3), (
        float(jnp.max(jnp.abs(y - y_ref_bf16))))
    assert jnp.allclose(y, y_ref_f32, atol=5e-2, rtol=5e-2), (
        float(jnp.max(jnp.abs(y - y_ref_f32))))

    # Also check the bit-faithful f32 path once (exercises the same fast-path kernel).
    y32 = jax.block_until_ready(
        flatten_head_forward(x, weight, bias, compute_dtype=jnp.float32,
                             dispatch_tiny_to_xla=False))
    assert jnp.allclose(y32, y_ref_f32, atol=1e-4, rtol=1e-4), (
        float(jnp.max(jnp.abs(y32 - y_ref_f32))))

    print("KERNEL_OK")
</pallas_src>

<mosaic_0001>
module attributes {stable_mosaic.version = 11 : i64} {
  func.func @_fh_kernel_resident(%arg0: i32, %arg1: memref<8x128xbf16, #tpu.memory_space<vmem>>, %arg2: memref<128x128xbf16, #tpu.memory_space<vmem>>, %arg3: memref<1x128xf32, #tpu.memory_space<vmem>>, %arg4: memref<8x128xf32, #tpu.memory_space<vmem>>) attributes {dimension_semantics = [#tpu.dimension_semantics<parallel>], iteration_bounds = array<i64: 1>, scalar_prefetch = 0 : i64, scratch_operands = 0 : i64, tpu.core_type = #tpu.core_type<tc>, window_params = [{transform_indices = @transform_0, window_bounds = array<i64: 8, 128>}, {pipeline_mode = #tpu.pipeline_mode<synchronous>, transform_indices = @transform_1, window_bounds = array<i64: 128, 128>}, {pipeline_mode = #tpu.pipeline_mode<synchronous>, transform_indices = @transform_2, window_bounds = array<i64: 1, 128>}, {transform_indices = @transform_3, window_bounds = array<i64: 8, 128>}]} {
    %c0 = arith.constant 0 : index
    %c0_0 = arith.constant 0 : index
    %0 = vector.load %arg1[%c0, %c0_0] : memref<8x128xbf16, #tpu.memory_space<vmem>>, vector<8x128xbf16>
    %c0_1 = arith.constant 0 : index
    %c0_2 = arith.constant 0 : index
    %1 = vector.load %arg2[%c0_1, %c0_2] : memref<128x128xbf16, #tpu.memory_space<vmem>>, vector<128x128xbf16>
    %cst = arith.constant dense<0.000000e+00> : vector<8x128xf32>
    %2 = tpu.matmul %0, %1, %cst {dimension_numbers = #tpu.dot_dimension_numbers<[1], [0], [0], [1], [0, 0, 1, 1], [], []>} : vector<8x128xbf16>, vector<128x128xbf16>, vector<8x128xf32> -> vector<8x128xf32>
    %c0_3 = arith.constant 0 : index
    %c0_4 = arith.constant 0 : index
    %3 = vector.load %arg3[%c0_3, %c0_4] : memref<1x128xf32, #tpu.memory_space<vmem>>, vector<1x128xf32>
    %4 = vector.broadcast %3 : vector<1x128xf32> to vector<8x128xf32>
    %5 = arith.addf %2, %4 : vector<8x128xf32>
    %c0_5 = arith.constant 0 : index
    %c0_6 = arith.constant 0 : index
    %6 = vector.load %arg4[%c0_5, %c0_6] : memref<8x128xf32, #tpu.memory_space<vmem>>, vector<8x128xf32>
    tpu.vector_store %arg4[%c0_5, %c0_6], %5 {strides = array<i32>} : memref<8x128xf32, #tpu.memory_space<vmem>>, vector<8x128xf32>,
    return
  }
  func.func @transform_0(%arg0: i32) -> (i32, i32) {
    %c0_i32 = arith.constant 0 : i32
    %c0_i32_0 = arith.constant 0 : i32
    return %arg0, %c0_i32 : i32, i32
  }
  func.func @transform_1(%arg0: i32) -> (i32, i32) {
    %c0_i32 = arith.constant 0 : i32
    %c0_i32_0 = arith.constant 0 : i32
    %c0_i32_1 = arith.constant 0 : i32
    return %c0_i32, %c0_i32_0 : i32, i32
  }
  func.func @transform_2(%arg0: i32) -> (i32, i32) {
    %c0_i32 = arith.constant 0 : i32
    %c0_i32_0 = arith.constant 0 : i32
    %c0_i32_1 = arith.constant 0 : i32
    return %c0_i32, %c0_i32_0 : i32, i32
  }
  func.func @transform_3(%arg0: i32) -> (i32, i32) {
    %c0_i32 = arith.constant 0 : i32
    %c0_i32_0 = arith.constant 0 : i32
    return %arg0, %c0_i32 : i32, i32
  }
}

</mosaic_0001>

<llo_original>
// kernel: tpu_custom_call.1
$region0: #{tpu_custom_call.1}
  #allocation0 [shape = 'u32[]', space=smem, size = 0x4, offset = 0x4, fixed_abs, tag = 'smem constant byte address 0x4 - core index']
  #allocation1 [shape = 'u32[144,128]{1,0:T(1,128)}', space=vmem, size = 0x12000, scoped, tag = 'internal scratch']
  %s0 = inlined_call_operand.hbm [shape: bf16[8,128], index: 0, kind: input, shape index: {}]
  %s1 = inlined_call_operand.hbm [shape: bf16[128,128], index: 1, kind: input, shape index: {}]
  %s2 = inlined_call_operand.vmem [shape: f32[1,128], index: 2, kind: input, shape index: {}]
  %s3 = inlined_call_operand.hbm [shape: f32[8,128], index: 3, kind: output, shape index: {}]
  %s4 = sld [smem:[#allocation0]]
  $region30: #{tpu_custom_call.1} parent=0
    _
  %s6 = ssub.s32 1, %s4
  %s7 = scalar_select 0, %s6, %s4
  $region1: #{tpu_custom_call.1} parent=0
    #allocation2 [shape = 'u8[2048]{0}', space=vmem, size = 0x800, scoped, tag = 'input window, operand 0, single buffered']
    #allocation3 [shape = 's32[1]{0}', space=sflag, size = 0x4, scoped, tag = 'scoped memory for tpu_custom_call.1']
    #allocation4 [shape = 's32[1]{0}', space=sflag, size = 0x4, scoped, tag = 'scoped memory for tpu_custom_call.1']
    #allocation5 [shape = 'u8[32768]{0}', space=vmem, size = 0x8000, scoped, tag = 'input window, operand 1, single buffered']
    #allocation6 [shape = 's32[1]{0}', space=sflag, size = 0x4, scoped, tag = 'scoped memory for tpu_custom_call.1']
    #allocation7 [shape = 'u8[4096]{0}', space=vmem, size = 0x1000, scoped, tag = 'output window, operand 0, single buffered']
    %8 = vsyncpa [#allocation3], 0
    %9 = vsyncpa [#allocation6], 0
    %10 = vsyncpa [#allocation4], 0
    // Predicated region
    $region2: #{tpu_custom_call.1} parent=1 // pred_check
      _
    $region3: #{tpu_custom_call.1} parent=1 // pred_check_branch
      %12 = sbr.rel (0) target = $region5
    $region4: #{tpu_custom_call.1} parent=1 // pred_region
      %s14 = ssub.s32 64, 64
      %15 = vsyncadd [#allocation3], %s14
      %s17 = sshll.u32 [#allocation2], 4
      %s18 = int_to_ptr.vmem [resolvable:$true] %s17
      %20 = dma.hbm_to_vmem [thread:$0]  %s0, 64, %s18, [#allocation3]
    $region5: #{tpu_custom_call.1} parent=1 // pred_fallthru
      _
    // Predicated region
    $region6: #{tpu_custom_call.1} parent=1 // pred_check
      _
    $region7: #{tpu_custom_call.1} parent=1 // pred_check_branch
      %22 = sbr.rel (0) target = $region9
    $region8: #{tpu_custom_call.1} parent=1 // pred_region
      %s24 = ssub.s32 1024, 1024
      %25 = vsyncadd [#allocation6], %s24
      %s26 = sshll.u32 [#allocation5], 4
      %s27 = int_to_ptr.vmem [resolvable:$true] %s26
      %32 = dma.hbm_to_vmem [thread:$0]  %s1, 1024, %s27, [#allocation6], 64, 64, 4
    $region9: #{tpu_custom_call.1} parent=1 // pred_fallthru
      _
    // Predicated region
    $region10: #{tpu_custom_call.1} parent=1 // pred_check
      _
    $region11: #{tpu_custom_call.1} parent=1 // pred_check_branch
      %34 = sbr.rel (0) target = $region13
    $region12: #{tpu_custom_call.1} parent=1 // pred_region
      _
    $region13: #{tpu_custom_call.1} parent=1 // pred_fallthru
      _
    // Predicated region
    $region14: #{tpu_custom_call.1} parent=1 // pred_check
      _
    $region15: #{tpu_custom_call.1} parent=1 // pred_check_branch
      %36 = sbr.rel (0) target = $region17
    $region16: #{tpu_custom_call.1} parent=1 // pred_region
      %37 = dma.done [#allocation3], 64
    $region17: #{tpu_custom_call.1} parent=1 // pred_fallthru
      _
    // Predicated region
    $region18: #{tpu_custom_call.1} parent=1 // pred_check
      _
    $region19: #{tpu_custom_call.1} parent=1 // pred_check_branch
      %39 = sbr.rel (0) target = $region21
    $region20: #{tpu_custom_call.1} parent=1 // pred_region
      %40 = dma.done [#allocation6], 1024
    $region21: #{tpu_custom_call.1} parent=1 // pred_fallthru
      _
    %v42 = vld [vmem:[#allocation2] sm:$0xf]
    %v43 = vld [vmem:[#allocation5] sm:$0xf]
    %v44 = vld [vmem:[#allocation5 + $0x4] sm:$0xf]
    %v45 = vld [vmem:[#allocation5 + $0x8] sm:$0xf]
    %v46 = vld [vmem:[#allocation5 + $0xc] sm:$0xf]
    %v47 = vld [vmem:[#allocation5 + $0x10] sm:$0xf]
    %v48 = vld [vmem:[#allocation5 + $0x14] sm:$0xf]
    %v49 = vld [vmem:[#allocation5 + $0x18] sm:$0xf]
    %v50 = vld [vmem:[#allocation5 + $0x1c] sm:$0xf]
    %v51 = vld [vmem:[#allocation5 + $0x20] sm:$0xf]
    %v52 = vld [vmem:[#allocation5 + $0x24] sm:$0xf]
    %v53 = vld [vmem:[#allocation5 + $0x28] sm:$0xf]
    %v54 = vld [vmem:[#allocation5 + $0x2c] sm:$0xf]
    %v55 = vld [vmem:[#allocation5 + $0x30] sm:$0xf]
    %v56 = vld [vmem:[#allocation5 + $0x34] sm:$0xf]
    %v57 = vld [vmem:[#allocation5 + $0x38] sm:$0xf]
    %v58 = vld [vmem:[#allocation5 + $0x3c] sm:$0xf]
    %v59 = vld [vmem:[%s2] sm:$0x1]
    %v61 = vlaneseq
    %v62 = vshrl.u32 %v61, 7
    %v63 = vsub.s32 0, %v62
    %v64 = vrot.slane %v59, %v63
    %v82 = vunpack.c.l.b16 %v43
    %v83 = vunpack.c.l.b16 %v44
    %v84 = vunpack.c.l.b16 %v45
    %v85 = vunpack.c.l.b16 %v46
    %v86 = vunpack.c.l.b16 %v47
    %v87 = vunpack.c.l.b16 %v48
    %v88 = vunpack.c.l.b16 %v49
    %v89 = vunpack.c.l.b16 %v50
    %v90 = vunpack.c.l.b16 %v51
    %v91 = vunpack.c.l.b16 %v52
    %v92 = vunpack.c.l.b16 %v53
    %v93 = vunpack.c.l.b16 %v54
    %v94 = vunpack.c.l.b16 %v55
    %v95 = vunpack.c.l.b16 %v56
    %v96 = vunpack.c.l.b16 %v57
    %v97 = vunpack.c.l.b16 %v58
    %v98 = vpack.c.b16 %v83, %v82
    %v99 = vpack.c.b16 %v85, %v84
    %v100 = vpack.c.b16 %v87, %v86
    %v101 = vpack.c.b16 %v89, %v88
    %v102 = vpack.c.b16 %v91, %v90
    %v103 = vpack.c.b16 %v93, %v92
    %v104 = vpack.c.b16 %v95, %v94
    %v105 = vpack.c.b16 %v97, %v96
    %114 = vmatprep.subr.bf16.mxu0 0
    %115 = vmatpush1.bf16.msra.mxu0 %v98
    %116 = vmatprep.subr.bf16.mxu0 0
    %117 = vmatpush1.bf16.msra.mxu0 %v99
    %118 = vmatprep.subr.bf16.mxu0 0
    %119 = vmatpush1.bf16.msra.mxu0 %v100
    %120 = vmatprep.subr.bf16.mxu0 0
    %121 = vmatpush1.bf16.msra.mxu0 %v101
    %122 = vmatprep.subr.bf16.mxu0 0
    %123 = vmatpush1.bf16.msra.mxu0 %v102
    %124 = vmatprep.subr.bf16.mxu0 0
    %125 = vmatpush1.bf16.msra.mxu0 %v103
    %126 = vmatprep.subr.bf16.mxu0 0
    %127 = vmatpush1.bf16.msra.mxu0 %v104
    %128 = vmatprep.subr.bf16.mxu0 0
    %129 = vmatpush1.bf16.msra.mxu0 %v105
    %130 = vmatprep.subr.bf16.mxu0 0
    %131 = vmatpush1.bf16.msra.mxu0 0
    %132 = vmatprep.subr.bf16.mxu0 0
    %133 = vmatpush1.bf16.msra.mxu0 0
    %134 = vmatprep.subr.bf16.mxu0 0
    %135 = vmatpush1.bf16.msra.mxu0 0
    %136 = vmatprep.subr.bf16.mxu0 0
    %137 = vmatpush1.bf16.msra.mxu0 0
    %138 = vmatprep.subr.bf16.mxu0 0
    %139 = vmatpush1.bf16.msra.mxu0 0
    %140 = vmatprep.subr.bf16.mxu0 0
    %141 = vmatpush1.bf16.msra.mxu0 0
    %142 = vmatprep.subr.bf16.mxu0 0
    %143 = vmatpush1.bf16.msra.mxu0 0
    %144 = vmatprep.subr.bf16.mxu0 0
    %145 = vmatpush1.bf16.msra.mxu0 0
    %146 = vmatprep.mubr.bf16.mxu0 0
    %147 = vmatmul.mubr.bf16.gmra.mrb[0].mxu0 %v42
    %v148 = vpop.f32.mrb[0].mxu0
    %v149 = vadd.f32 %v64, %v148
    %v150 = vpop.f32.mrb[0].mxu0
    %v151 = vpop.f32.mrb[0].mxu0
    %v152 = vpop.f32.mrb[0].mxu0
    %153 = vdwg.mxu0
    %154 = vst [vmem:[#allocation7] sm:$0xff] %v149
    // Predicated region
    $region22: #{tpu_custom_call.1} parent=1 // pred_check
      _
    $region23: #{tpu_custom_call.1} parent=1 // pred_check_branch
      %156 = sbr.rel (0) target = $region25
    $region24: #{tpu_custom_call.1} parent=1 // pred_region
      %s158 = ssub.s32 128, 128
      %159 = vsyncadd [#allocation4], %s158
      %s161 = sshll.u32 [#allocation7], 4
      %s162 = int_to_ptr.vmem [resolvable:$true] %s161
      %164 = dma.vmem_to_hbm [thread:$0]  %s162, 128, %s3, [#allocation4]
    $region25: #{tpu_custom_call.1} parent=1 // pred_fallthru
      _
    // Predicated region
    $region26: #{tpu_custom_call.1} parent=1 // pred_check
      _
    $region27: #{tpu_custom_call.1} parent=1 // pred_check_branch
      %166 = sbr.rel (0) target = $region29
    $region28: #{tpu_custom_call.1} parent=1 // pred_region
      %167 = dma.done [#allocation4], 128
    $region29: #{tpu_custom_call.1} parent=1 // pred_fallthru
      _
    %168 = vsyncpa [#allocation3], 1
    %169 = vsyncpa [#allocation6], 1
    %170 = vsyncpa [#allocation4], 1

</llo_original>
